<compile_context>
chip_gen: v7x
topology: tpu7x:2x2x1
jax: 0.10.0
libtpu: 0.0.40
codegen_flags: <defaults>
</compile_context>

<pallas_src>
import functools

import jax
import jax.numpy as jnp
from jax.experimental import pallas as pl
from jax.experimental.pallas import tpu as pltpu

LANES = 128            # vreg lane width; edge e -> (e // 128, e % 128)
MAX_BLOCK_ROWS = 4096  # (4096,128): 2 MiB f32 + 0.5 MiB int8 per buffer -> ~5 MiB double-buffered
FT_PAD = -1.0e30       # pad value such that CE(pad, label=0) == 0.0 exactly in f32


def _round_up(x, m):
    return ((x + m - 1) // m) * m


def _edge_ce_kernel(ft_ref, same_ref, part_ref):
    """One grid step handles a (block_rows, 128) slab of edges.

    ft_ref  : (R, 128) f32  logit difference p1 - p0 (padded tail = -1e30)
    same_ref: (R, 128) int8 label (1 if same batch & group, 0 otherwise; pad = 0)
    part_ref: (1, 128) f32  per-lane partial sums of the cross entropy
    """
    ft = ft_ref[...]
    same_f = same_ref[...].astype(jnp.float32)     # 0.0 / 1.0

    # 2-class cross entropy as a stable softplus:
    #   label 0: lse - p0 = softplus(+ft)
    #   label 1: lse - p1 = softplus(-ft)
    x = ft * (1.0 - 2.0 * same_f)
    ce = jnp.maximum(x, 0.0) + jnp.log(1.0 + jnp.exp(-jnp.abs(x)))
    # Padded tail: ft = -1e30, same = 0  ->  x = -1e30  ->  ce == 0.0 exactly,
    # so no explicit validity mask is needed.

    # Per-block lane partials (sublane reduce only); the cross-lane reduce and
    # the mean are deferred to the wrapper (tiny).
    part_ref[...] = jnp.sum(ce, axis=0, keepdims=True)


@functools.partial(jax.jit, static_argnames=("max_block_rows",))
def mst_edge_channel_loss(edge_pred, edge_index, data_grps, *,
                          max_block_rows=MAX_BLOCK_ROWS):
    """
    edge_pred : (E, 2) float32  — two-channel edge logits
    edge_index: (2, E) int32    — node indices (i, j) per edge
    data_grps : (N, F) float32  — node features; col -2 = batch id, col -1 = group id
    Returns dict with 'loss' (scalar f32), 'edge_assn' (E,) int32, 'ft' (E,) f32.
    """
    E = edge_pred.shape[0]

    # ---- glue kept in JAX/XLA: node-attribute gather + edge_assignment ------
    # (data-dependent gather; fused by XLA with the plane construction below)
    batch = data_grps[:, -2].astype(jnp.int32)
    group = data_grps[:, -1].astype(jnp.int32)
    same = jnp.logical_and(batch[edge_index[0]] == batch[edge_index[1]],
                           group[edge_index[0]] == group[edge_index[1]])
    edge_assn = same.astype(jnp.int32)

    # ft = edge_pred[:,1] - edge_pred[:,0]; the CE only needs this difference.
    ft = edge_pred[:, 1] - edge_pred[:, 0]

    # ---- 2-D edge-major layout -----------------------------------------------
    rows_needed = max(1, -(-E // LANES))
    # block rows multiple of 32 so f32 (8,128) AND int8 (32,128) tilings are clean
    block_rows = _round_up(min(max_block_rows, _round_up(rows_needed, 32)), 32)
    total_rows = _round_up(rows_needed, block_rows)
    e_pad = total_rows * LANES
    n_blocks = total_rows // block_rows

    ft_plane = jnp.pad(ft, (0, e_pad - E),
                       constant_values=FT_PAD).reshape(total_rows, LANES)
    same_plane = jnp.pad(same.astype(jnp.int8),
                         (0, e_pad - E)).reshape(total_rows, LANES)

    edge_blk = pl.BlockSpec((block_rows, LANES), lambda i: (i, 0))

    partials = pl.pallas_call(
        _edge_ce_kernel,
        out_shape=jax.ShapeDtypeStruct((n_blocks, LANES), jnp.float32),
        grid_spec=pltpu.PrefetchScalarGridSpec(
            num_scalar_prefetch=0,
            grid=(n_blocks,),
            in_specs=[edge_blk, edge_blk],
            out_specs=pl.BlockSpec((1, LANES), lambda i: (i, 0)),
        ),
        compiler_params=pltpu.CompilerParams(
            # No carried accumulator -> fully parallel grid (2-TC sharding on v7x).
            dimension_semantics=("parallel",),
        ),
    )(ft_plane, same_plane)

    loss = jnp.sum(partials) / jnp.float32(max(E, 1))        # reduction='mean'

    return {
        "loss": loss,
        "loss_raw": loss,
        "edge_assn": edge_assn,
        "ft": ft,
    }


def _reference(edge_pred, edge_index, data_grps):
    batch = data_grps[:, -2].astype(jnp.int32)
    group = data_grps[:, -1].astype(jnp.int32)
    same = jnp.logical_and(batch[edge_index[0]] == batch[edge_index[1]],
                           group[edge_index[0]] == group[edge_index[1]])
    y = same.astype(jnp.int32)
    logp = jax.nn.log_softmax(edge_pred, axis=-1)
    ce = -jnp.take_along_axis(logp, y[:, None], axis=-1)[:, 0]
    return jnp.mean(ce), y


if __name__ == "__main__":
    def make_case(E, N, key):
        k1, k2, k3, k4, k5 = jax.random.split(key, 5)
        F = 6  # node feature columns; [-2]=batch, [-1]=group

        edge_pred = jax.random.normal(k1, (E, 2), dtype=jnp.float32)
        edge_index = jax.random.randint(k2, (2, E), 0, N, dtype=jnp.int32)
        feats = jax.random.normal(k3, (N, F - 2), dtype=jnp.float32)
        batch_col = jax.random.randint(k4, (N, 1), 0, 2).astype(jnp.float32)
        group_col = jax.random.randint(k5, (N, 1), 0, 4).astype(jnp.float32)
        data_grps = jnp.concatenate([feats, batch_col, group_col], axis=1)
        return edge_pred, edge_index, data_grps

    def check(edge_pred, edge_index, data_grps, **kw):
        out = mst_edge_channel_loss(edge_pred, edge_index, data_grps, **kw)
        jax.block_until_ready(out["loss"])

        ref_loss, ref_assn = _reference(edge_pred, edge_index, data_grps)
        assert jnp.allclose(out["loss"], ref_loss, atol=1e-5, rtol=1e-4), (
            out["loss"], ref_loss)
        assert bool(jnp.all(out["edge_assn"] == ref_assn))
        ref_ft = edge_pred[:, 1] - edge_pred[:, 0]
        assert jnp.allclose(out["ft"], ref_ft, atol=1e-6)

    key = jax.random.PRNGKey(0)
    ka, kb = jax.random.split(key)

    # Small case: single tiny block, heavy padding (exercises exact-zero pad CE).
    check(*make_case(E=200, N=64, key=ka))

    # Larger case with the default (big) block: single-block grid.
    big = make_case(E=140_000, N=256, key=kb)
    check(*big)

    # Same inputs with a small block cap: exercises the multi-block parallel grid.
    check(*big, max_block_rows=256)

    print("KERNEL_OK")
</pallas_src>

<mosaic_0001>
module attributes {stable_mosaic.version = 11 : i64} {
  func.func @_edge_ce_kernel(%arg0: i32, %arg1: memref<32x128xf32, #tpu.memory_space<vmem>>, %arg2: memref<32x128xi8, #tpu.memory_space<vmem>>, %arg3: memref<1x128xf32, #tpu.memory_space<vmem>>) attributes {dimension_semantics = [#tpu.dimension_semantics<parallel>], iteration_bounds = array<i64: 1>, scalar_prefetch = 0 : i64, scratch_operands = 0 : i64, tpu.core_type = #tpu.core_type<tc>, window_params = [{transform_indices = @transform_0, window_bounds = array<i64: 32, 128>}, {transform_indices = @transform_1, window_bounds = array<i64: 32, 128>}, {transform_indices = @transform_2, window_bounds = array<i64: 1, 128>}]} {
    %c0 = arith.constant 0 : index
    %c0_0 = arith.constant 0 : index
    %0 = vector.load %arg1[%c0, %c0_0] : memref<32x128xf32, #tpu.memory_space<vmem>>, vector<32x128xf32>
    %c0_1 = arith.constant 0 : index
    %c0_2 = arith.constant 0 : index
    %1 = vector.load %arg2[%c0_1, %c0_2] : memref<32x128xi8, #tpu.memory_space<vmem>>, vector<32x128xi8>
    %2 = arith.sitofp %1 : vector<32x128xi8> to vector<32x128xf32>
    %cst = arith.constant 2.000000e+00 : f32
    %3 = vector.broadcast %cst : f32 to vector<32x128xf32>
    %4 = arith.mulf %3, %2 : vector<32x128xf32>
    %cst_3 = arith.constant 1.000000e+00 : f32
    %5 = vector.broadcast %cst_3 : f32 to vector<32x128xf32>
    %6 = arith.subf %5, %4 : vector<32x128xf32>
    %7 = arith.mulf %0, %6 : vector<32x128xf32>
    %cst_4 = arith.constant 0.000000e+00 : f32
    %8 = vector.broadcast %cst_4 : f32 to vector<32x128xf32>
    %9 = arith.maximumf %7, %8 : vector<32x128xf32>
    %10 = math.absf %7 : vector<32x128xf32>
    %cst_5 = arith.constant 0.000000e+00 : f32
    %11 = vector.broadcast %cst_5 : f32 to vector<32x128xf32>
    %12 = arith.subf %11, %10 : vector<32x128xf32>
    %13 = math.exp %12 : vector<32x128xf32>
    %cst_6 = arith.constant 1.000000e+00 : f32
    %14 = vector.broadcast %cst_6 : f32 to vector<32x128xf32>
    %15 = arith.addf %14, %13 : vector<32x128xf32>
    %16 = math.log %15 : vector<32x128xf32>
    %17 = arith.addf %9, %16 : vector<32x128xf32>
    %cst_7 = arith.constant dense<0.000000e+00> : vector<128xf32>
    %18 = vector.multi_reduction <add>, %17, %cst_7 [0] : vector<32x128xf32> to vector<128xf32>
    %19 = vector.shape_cast %18 : vector<128xf32> to vector<1x128xf32>
    %c0_8 = arith.constant 0 : index
    %c0_9 = arith.constant 0 : index
    %20 = vector.load %arg3[%c0_8, %c0_9] : memref<1x128xf32, #tpu.memory_space<vmem>>, vector<1x128xf32>
    tpu.vector_store %arg3[%c0_8, %c0_9], %19 {strides = array<i32>} : memref<1x128xf32, #tpu.memory_space<vmem>>, vector<1x128xf32>,
    return
  }
  func.func @transform_0(%arg0: i32) -> (i32, i32) {
    %c0_i32 = arith.constant 0 : i32
    %c0_i32_0 = arith.constant 0 : i32
    return %arg0, %c0_i32 : i32, i32
  }
  func.func @transform_1(%arg0: i32) -> (i32, i32) {
    %c0_i32 = arith.constant 0 : i32
    %c0_i32_0 = arith.constant 0 : i32
    return %arg0, %c0_i32 : i32, i32
  }
  func.func @transform_2(%arg0: i32) -> (i32, i32) {
    %c0_i32 = arith.constant 0 : i32
    %c0_i32_0 = arith.constant 0 : i32
    return %arg0, %c0_i32 : i32, i32
  }
}

</mosaic_0001>

<llo_original>
// kernel: mst_edge_channel_loss.1
$region0: #{mst_edge_channel_loss.1}
  #allocation0 [shape = 'u32[]', space=smem, size = 0x4, offset = 0x4, fixed_abs, tag = 'smem constant byte address 0x4 - core index']
  #allocation1 [shape = 'u32[144,128]{1,0:T(1,128)}', space=vmem, size = 0x12000, scoped, tag = 'internal scratch']
  %s0 = inlined_call_operand.vmem [shape: f32[32,128], index: 0, kind: input, shape index: {}]
  %s1 = inlined_call_operand.vmem [shape: s8[32,128], index: 1, kind: input, shape index: {}]
  %s2 = inlined_call_operand.vmem [shape: f32[1,128], index: 2, kind: output, shape index: {}]
  %s3 = sld [smem:[#allocation0]]
  $region18: #{mst_edge_channel_loss.1} parent=0
    _
  %s5 = ssub.s32 1, %s3
  %s6 = scalar_select 0, %s5, %s3
  // Predicated region
  $region2: #{mst_edge_channel_loss.1} parent=0 // pred_check
    _
  $region3: #{mst_edge_channel_loss.1} parent=0 // pred_check_branch
    %8 = sbr.rel (0) target = $region5
  $region4: #{mst_edge_channel_loss.1} parent=0 // pred_region
    _
  $region5: #{mst_edge_channel_loss.1} parent=0 // pred_fallthru
    _
  // Predicated region
  $region6: #{mst_edge_channel_loss.1} parent=0 // pred_check
    _
  $region7: #{mst_edge_channel_loss.1} parent=0 // pred_check_branch
    %10 = sbr.rel (0) target = $region9
  $region8: #{mst_edge_channel_loss.1} parent=0 // pred_region
    _
  $region9: #{mst_edge_channel_loss.1} parent=0 // pred_fallthru
    _
  %v11 = vld [vmem:[%s0] sm:$0xff]
  %v12 = vld [vmem:[%s0 + $0x8] sm:$0xff]
  %v13 = vld [vmem:[%s0 + $0x10] sm:$0xff]
  %v14 = vld [vmem:[%s0 + $0x18] sm:$0xff]
  %v15 = vld [vmem:[%s1] sm:$0xff]
  %v16 = vunpack.c.0.s8 %v15
  %v17 = vunpack.c.1.s8 %v15
  %v18 = vunpack.c.2.s8 %v15
  %v19 = vunpack.c.3.s8 %v15
  %v20 = vcvt.s32.f32 %v16
  %v21 = vcvt.s32.f32 %v17
  %v22 = vcvt.s32.f32 %v18
  %v23 = vcvt.s32.f32 %v19
  %v24 = vmul.f32 %v20, 2.0
  %v25 = vmul.f32 %v21, 2.0
  %v26 = vmul.f32 %v22, 2.0
  %v27 = vmul.f32 %v23, 2.0
  %v28 = vsub.f32 1.0, %v24
  %v29 = vsub.f32 1.0, %v25
  %v30 = vsub.f32 1.0, %v26
  %v31 = vsub.f32 1.0, %v27
  %v32 = vmul.f32 %v11, %v28
  %v33 = vmul.f32 %v12, %v29
  %v34 = vmul.f32 %v13, %v30
  %v35 = vmul.f32 %v14, %v31
  %v36 = vmax.f32 %v32, 0.0
  %v37 = vmax.f32 %v33, 0.0
  %v38 = vmax.f32 %v34, 0.0
  %v39 = vmax.f32 %v35, 0.0
  %v40 = vand.u32 2147483647, %v32
  %v41 = vand.u32 2147483647, %v33
  %v42 = vand.u32 2147483647, %v34
  %v43 = vand.u32 2147483647, %v35
  %v44 = vsub.f32 0.0, %v40
  %v45 = vsub.f32 0.0, %v41
  %v46 = vsub.f32 0.0, %v42
  %v47 = vsub.f32 0.0, %v43
  %v48 = vmul.f32 %v44, 1.442695
  %v49 = vpow.pop %v48
  %v50 = vmul.f32 %v45, 1.442695
  %v51 = vpow.pop %v50
  %v52 = vmul.f32 %v46, 1.442695
  %v53 = vpow.pop %v52
  %v54 = vmul.f32 %v47, 1.442695
  %v55 = vpow.pop %v54
  %v56 = vadd.f32 %v49, 1.0
  %v57 = vadd.f32 %v51, 1.0
  %v58 = vadd.f32 %v53, 1.0
  %v59 = vadd.f32 %v55, 1.0
  %v60 = vlog2.pop %v56
  %v61 = vmul.f32 %v60, 0.6931472
  %v62 = vlog2.pop %v57
  %v63 = vmul.f32 %v62, 0.6931472
  %v64 = vlog2.pop %v58
  %v65 = vmul.f32 %v64, 0.6931472
  %v66 = vlog2.pop %v59
  %v67 = vmul.f32 %v66, 0.6931472
  %v68 = vadd.f32 %v36, %v61
  %v69 = vadd.f32 %v37, %v63
  %v70 = vadd.f32 %v38, %v65
  %v71 = vadd.f32 %v39, %v67
  %v72 = vadd.f32 %v68, %v69
  %v73 = vadd.f32 %v72, %v70
  %v74 = vadd.f32 %v73, %v71
  %v75 = vrot.slane %v74, 4
  %v76 = vadd.f32 %v74, %v75
  %v77 = vrot.slane %v76, 2
  %v78 = vadd.f32 %v76, %v77
  %v79 = vrot.slane %v78, 1
  %v80 = vadd.f32 %v78, %v79
  %81 = vst [vmem:[%s2] sm:$0x1] %v80
  // Predicated region
  $region10: #{mst_edge_channel_loss.1} parent=0 // pred_check
    _
  $region11: #{mst_edge_channel_loss.1} parent=0 // pred_check_branch
    %83 = sbr.rel (0) target = $region13
  $region12: #{mst_edge_channel_loss.1} parent=0 // pred_region
    _
  $region13: #{mst_edge_channel_loss.1} parent=0 // pred_fallthru
    _
  // Predicated region
  $region14: #{mst_edge_channel_loss.1} parent=0 // pred_check
    _
  $region15: #{mst_edge_channel_loss.1} parent=0 // pred_check_branch
    %85 = sbr.rel (0) target = $region17
  $region16: #{mst_edge_channel_loss.1} parent=0 // pred_region
    _
  $region17: #{mst_edge_channel_loss.1} parent=0 // pred_fallthru
    _

</llo_original>
